<compile_context>
chip_gen: v5e
topology: v5e:2x2
jax: 0.10.0
libtpu: 0.0.40
codegen_flags: <defaults>
</compile_context>

<pallas_src>
import functools

import jax
import jax.numpy as jnp
from jax.experimental import pallas as pl
from jax.experimental.pallas import tpu as pltpu


def _round_up(x, m):
    return (x + m - 1) // m * m


def _conv_fusion_kernel(x_ref, o_ref, acc_ref, *, hw, thw, j_steps, needs_mask):
    """Per-row spatial partial sums.

    x_ref:   (TR, THW) tile of x viewed as (N*C, H*W)
    o_ref:   (1, TR, 1) partial per-row sums for this HW super-split
    acc_ref: (TR, 1) f32 accumulator, resident across the reduction axis
    """
    s = pl.program_id(0)   # HW super-split (parallel; feeds the 2nd TC on v7x)
    j = pl.program_id(2)   # HW tile within the split (reduction axis, innermost)

    @pl.when(j == 0)
    def _init():
        acc_ref[...] = jnp.zeros_like(acc_ref)

    if not needs_mask:
        # Statically known: every tile is fully in-bounds.
        acc_ref[...] += jnp.sum(x_ref[...].astype(jnp.float32), axis=-1,
                                keepdims=True)
    else:
        start = (s * j_steps + j) * thw          # logical lane offset of this tile

        @pl.when(start + thw <= hw)              # full tile: unmasked hot path
        def _full():
            acc_ref[...] += jnp.sum(x_ref[...].astype(jnp.float32), axis=-1,
                                    keepdims=True)

        @pl.when(start + thw > hw)               # ragged tail (or overhang step)
        def _tail():
            lane = jax.lax.broadcasted_iota(jnp.int32, x_ref.shape, 1)
            xv = jnp.where(start + lane < hw,
                           x_ref[...].astype(jnp.float32), 0.0)
            acc_ref[...] += jnp.sum(xv, axis=-1, keepdims=True)

    @pl.when(j == j_steps - 1)
    def _finalize():
        o_ref[0] = acc_ref[...]


def conv_fusion(x_nchw, weight, bias, *, tile_budget_bytes=8 * 1024 * 1024):
    """ConvFusion forward: AdaptiveAvgPool2d(1)(Conv2d(C, 1, 1)(x)).

    x_nchw: (N, C, H, W); weight: (1, C, 1, 1); bias: (1,). Returns (N, 1, 1, 1).
    """
    n, c, h, w_sp = x_nchw.shape
    hw = h * w_sp
    nr = n * c

    # Fold batch+channel onto the sublane axis (free reshape for contiguous NCHW).
    x2d = x_nchw.reshape(nr, hw)
    itemsize = x2d.dtype.itemsize
    sub = {4: 8, 2: 16, 1: 32}.get(itemsize, 8)  # sublane packing granularity

    hw_pad = _round_up(hw, 128)

    # ---- tiling: size the x tile by sublane-padded bytes, not by a lane cap ----
    # Pallas double-buffers the tile, so ~8 MiB/tile -> ~16 MiB of VMEM.
    tr = nr if nr <= sub else sub
    tr_pad = _round_up(tr, sub)
    max_lanes = max(128, (tile_budget_bytes // (tr_pad * itemsize)) // 128 * 128)
    thw = min(hw_pad, max_lanes)
    if nr > sub and thw >= hw_pad:
        # Whole (padded) spatial extent fits in one tile: spend leftover budget
        # on more rows (keep tr <= nr so the block never exceeds the array).
        max_rows = max(sub, (tile_budget_bytes // (thw * itemsize)) // sub * sub)
        tr = min((nr // sub) * sub, max_rows)

    r_blocks = pl.cdiv(nr, tr)
    # Guarantee >= 2 parallel work units so v7x's second TensorCore is used even
    # for tiny N*C (no effect on single-core v5e/v6e beyond one extra tiny step).
    if r_blocks < 2 and pl.cdiv(hw_pad, thw) < 2 and hw_pad >= 256:
        thw = _round_up(pl.cdiv(hw_pad, 2), 128)

    jt = pl.cdiv(hw, thw)                 # total HW tiles
    s_splits = 2 if jt >= 2 else 1        # HW super-splits (leading parallel axis)
    j_steps = pl.cdiv(jt, s_splits)       # reduction steps per split
    needs_mask = (hw % thw != 0) or (s_splits * j_steps != jt)

    grid = (s_splits, r_blocks, j_steps)

    kernel = functools.partial(_conv_fusion_kernel, hw=hw, thw=thw,
                               j_steps=j_steps, needs_mask=needs_mask)

    def x_index_map(s, r, j):
        # Clamp so a (fully masked) overhang step never addresses an OOB block.
        return (r, jnp.minimum(s * j_steps + j, jt - 1))

    partials = pl.pallas_call(
        kernel,
        out_shape=jax.ShapeDtypeStruct((s_splits, nr, 1), jnp.float32),
        grid=grid,
        in_specs=[pl.BlockSpec((tr, thw), x_index_map)],
        out_specs=pl.BlockSpec((1, tr, 1), lambda s, r, j: (s, r, 0)),
        scratch_shapes=[pltpu.VMEM((tr, 1), jnp.float32)],
        compiler_params=pltpu.CompilerParams(
            dimension_semantics=("parallel", "parallel", "arbitrary"),
            vmem_limit_bytes=48 * 1024 * 1024,  # <= ~48 MiB: safe on v7x's 64 MiB
        ),
    )(x2d)

    # Tiny O(N*C) epilogue (negligible vs. the single HBM read of x): combine the
    # per-split partials, apply the 1x1-conv per-channel weights, mean, bias.
    row_sums = partials.sum(axis=0)[:, 0].reshape(n, c)          # (N, C) f32
    w_vec = weight.reshape(c).astype(jnp.float32)                # (C,)
    b = bias.astype(jnp.float32).reshape(())                     # scalar
    y = row_sums @ w_vec * (1.0 / float(hw)) + b                 # (N,)
    out_dtype = jnp.result_type(x_nchw.dtype, weight.dtype)
    return y.reshape(n, 1, 1, 1).astype(out_dtype)


if __name__ == "__main__":
    key = jax.random.PRNGKey(0)
    kx, kw, kb = jax.random.split(key, 3)

    # Shapes implied by the module forward (small, deterministic).
    N, C, H, W = 2, 4, 16, 16
    x = jax.random.normal(kx, (N, C, H, W), dtype=jnp.float32)
    weight = jax.random.normal(kw, (1, C, 1, 1), dtype=jnp.float32) * 0.1
    bias = jax.random.normal(kb, (1,), dtype=jnp.float32) * 0.1

    out = jax.block_until_ready(conv_fusion(x, weight, bias))
    ref = (jnp.einsum("nchw,c->n", x, weight[0, :, 0, 0]) / (H * W)
           + bias[0]).reshape(N, 1, 1, 1)
    assert out.shape == (N, 1, 1, 1)
    assert jnp.allclose(out, ref, atol=1e-5, rtol=1e-5)

    # Ragged / non-aligned shape exercising the in-kernel masking path
    # (no jnp.pad anywhere in the wrapper).
    N2, C2, H2, W2 = 3, 5, 7, 9
    x2 = jax.random.normal(kx, (N2, C2, H2, W2), dtype=jnp.float32)
    w2 = jax.random.normal(kw, (1, C2, 1, 1), dtype=jnp.float32) * 0.1
    b2 = jax.random.normal(kb, (1,), dtype=jnp.float32) * 0.1
    out2 = jax.block_until_ready(conv_fusion(x2, w2, b2))
    ref2 = (jnp.einsum("nchw,c->n", x2, w2[0, :, 0, 0]) / (H2 * W2)
            + b2[0]).reshape(N2, 1, 1, 1)
    assert jnp.allclose(out2, ref2, atol=1e-5, rtol=1e-5)

    print("KERNEL_OK")
</pallas_src>

<mosaic_0001>
module attributes {stable_mosaic.version = 11 : i64} {
  func.func @_conv_fusion_kernel(%arg0: i32, %arg1: i32, %arg2: i32, %arg3: memref<8x128xf32, #tpu.memory_space<vmem>>, %arg4: memref<1x8x1xf32, #tpu.memory_space<vmem>>, %arg5: memref<8x1xf32, #tpu.memory_space<vmem>>) attributes {dimension_semantics = [#tpu.dimension_semantics<parallel>, #tpu.dimension_semantics<parallel>, #tpu.dimension_semantics<arbitrary>], iteration_bounds = array<i64: 2, 1, 1>, scalar_prefetch = 0 : i64, scratch_operands = 1 : i64, tpu.core_type = #tpu.core_type<tc>, window_params = [{transform_indices = @transform_0, window_bounds = array<i64: 8, 128>}, {transform_indices = @transform_1, window_bounds = array<i64: 1, 8, 1>}]} {
    %c0_i32 = arith.constant 0 : i32
    %0 = arith.cmpi eq, %arg2, %c0_i32 : i32
    %1 = arith.extui %0 : i1 to i32
    %c0_i32_0 = arith.constant 0 : i32
    %2 = arith.cmpi ne, %1, %c0_i32_0 : i32
    scf.if %2 {
      %cst_8 = arith.constant 0.000000e+00 : f32
      %12 = vector.broadcast %cst_8 : f32 to vector<8x1xf32>
      %c0_9 = arith.constant 0 : index
      %c0_10 = arith.constant 0 : index
      %13 = vector.load %arg5[%c0_9, %c0_10] : memref<8x1xf32, #tpu.memory_space<vmem>>, vector<8x1xf32>
      tpu.vector_store %arg5[%c0_9, %c0_10], %12 {strides = array<i32>} : memref<8x1xf32, #tpu.memory_space<vmem>>, vector<8x1xf32>,
    } else {
    }
    %c0 = arith.constant 0 : index
    %c0_1 = arith.constant 0 : index
    %3 = vector.load %arg5[%c0, %c0_1] : memref<8x1xf32, #tpu.memory_space<vmem>>, vector<8x1xf32>
    %c0_2 = arith.constant 0 : index
    %c0_3 = arith.constant 0 : index
    %4 = vector.load %arg3[%c0_2, %c0_3] : memref<8x128xf32, #tpu.memory_space<vmem>>, vector<8x128xf32>
    %cst = arith.constant dense<0.000000e+00> : vector<8xf32>
    %5 = vector.multi_reduction <add>, %4, %cst [1] : vector<8x128xf32> to vector<8xf32>
    %6 = vector.shape_cast %5 : vector<8xf32> to vector<8x1xf32>
    %7 = arith.addf %3, %6 : vector<8x1xf32>
    %c0_4 = arith.constant 0 : index
    %c0_5 = arith.constant 0 : index
    %8 = vector.load %arg5[%c0_4, %c0_5] : memref<8x1xf32, #tpu.memory_space<vmem>>, vector<8x1xf32>
    tpu.vector_store %arg5[%c0_4, %c0_5], %7 {strides = array<i32>} : memref<8x1xf32, #tpu.memory_space<vmem>>, vector<8x1xf32>,
    %c0_i32_6 = arith.constant 0 : i32
    %9 = arith.cmpi eq, %arg2, %c0_i32_6 : i32
    %10 = arith.extui %9 : i1 to i32
    %c0_i32_7 = arith.constant 0 : i32
    %11 = arith.cmpi ne, %10, %c0_i32_7 : i32
    scf.if %11 {
      %c0_8 = arith.constant 0 : index
      %c0_9 = arith.constant 0 : index
      %12 = vector.load %arg5[%c0_8, %c0_9] : memref<8x1xf32, #tpu.memory_space<vmem>>, vector<8x1xf32>
      %c0_10 = arith.constant 0 : index
      %c0_11 = arith.constant 0 : index
      %c0_12 = arith.constant 0 : index
      %13 = vector.load %arg4[%c0_10, %c0_11, %c0_12] : memref<1x8x1xf32, #tpu.memory_space<vmem>>, vector<1x8x1xf32>
      %14 = vector.shape_cast %13 : vector<1x8x1xf32> to vector<8x1xf32>
      %15 = vector.shape_cast %12 : vector<8x1xf32> to vector<1x8x1xf32>
      tpu.vector_store %arg4[%c0_10, %c0_11, %c0_12], %15 {strides = array<i32>} : memref<1x8x1xf32, #tpu.memory_space<vmem>>, vector<1x8x1xf32>,
    } else {
    }
    return
  }
  func.func @transform_0(%arg0: i32, %arg1: i32, %arg2: i32) -> (i32, i32) {
    %c1_i32 = arith.constant 1 : i32
    %0 = arith.muli %arg0, %c1_i32 : i32
    %1 = arith.addi %0, %arg2 : i32
    %c1_i32_0 = arith.constant 1 : i32
    %2 = arith.minsi %1, %c1_i32_0 : i32
    %c0_i32 = arith.constant 0 : i32
    return %arg1, %2 : i32, i32
  }
  func.func @transform_1(%arg0: i32, %arg1: i32, %arg2: i32) -> (i32, i32, i32) {
    %c0_i32 = arith.constant 0 : i32
    %c0_i32_0 = arith.constant 0 : i32
    return %arg0, %arg1, %c0_i32 : i32, i32, i32
  }
}

</mosaic_0001>

<llo_original>
// kernel: tpu_custom_call.1
$region0: #{tpu_custom_call.1}
  #allocation0 [shape = 'u32[]', space=smem, size = 0x4, offset = 0x4, fixed_abs, tag = 'smem constant byte address 0x4 - core index']
  #allocation1 [shape = 'u32[72,128]{1,0:T(1,128)}', space=vmem, size = 0x9000, scoped, tag = 'internal scratch']
  #allocation2 [shape = 'f32[8,1]{1,0:T(8,128)}', space=vmem, size = 0x1000, scoped, tag = 'scratch operand']
  %s0 = inlined_call_operand.hbm [shape: f32[8,256], index: 0, kind: input, shape index: {}]
  %s1 = inlined_call_operand.vmem [shape: f32[2,8,1], index: 1, kind: output, shape index: {}]
  %s2 = sld [smem:[#allocation0]]
  $region49: #{tpu_custom_call.1} parent=0
    _
  %s4 = ssub.s32 1, %s2
  %s5 = scalar_select 0, %s4, %s2
  $region1: #{tpu_custom_call.1} parent=0
    #allocation3 [shape = 'u8[8192]{0}', space=vmem, size = 0x2000, scoped, tag = 'input window, operand 0']
    #allocation4 [shape = 's32[2]{0}', space=sflag, size = 0x8, scoped, tag = 'scoped memory for tpu_custom_call.1']
    %6 = vsyncpa [#allocation4], 0
    %s7 = scalar_lea.sflag [#allocation4], 1
    %8 = vsyncpa %s7, 0
    loop: start=0, step=1, limit=4
    $region2: #{tpu_custom_call.1} parent=1 // loop_pre_header
      _
    $region3: #{tpu_custom_call.1} parent=1 // loop_header
      %s10 = sphi 0, %s14
      %p11 = scmp.ge.s32.totalorder %s10, 4
      %s17 = sphi 0, %s36
      %s18 = sphi 0, %s32
      %s19 = sphi 0, %s28
      %s20 = sphi 0, %s17
      %s21 = sphi 0, %s18
      %s22 = sphi 0, %s19
      %s23 = sphi 0, %s20
      %s24 = sphi 0, %s21
      %s25 = sphi 0, %s22
      %s47 = sphi 0, %s49
      %s50 = sphi 0, %s47
      %s51 = sphi 0, %s50
      %s67 = sphi 0, %s51
      %s75 = sphi 0, %s77
      %s78 = sphi 0, %s75
      %s79 = sphi 0, %s78
      %s95 = sphi 0, %s79
    $region4: #{tpu_custom_call.1} parent=1 // loop_header_branch
      %13 = sbr.rel (%p11) target = $region8
    $region5: #{tpu_custom_call.1} parent=1 // loop_body
      %s15 = ssub.s32 %s10, 1
      %s16 = ssub.s32 %s10, 2
      %s26 = sadd.s32 1, %s19
      %p27 = scmp.ge.s32.totalorder %s26, 1
      %s28 = scalar_select %p27, 0, %s26
      %s29 = sadd.s32 1, %s18
      %s30 = scalar_select %p27, %s29, %s18
      %p31 = scmp.ge.s32.totalorder %s30, 1
      %s32 = scalar_select %p31, 0, %s30
      %s33 = sadd.s32 1, %s17
      %s34 = scalar_select %p31, %s33, %s17
      %p35 = scmp.ge.s32.totalorder %s34, 2
      %s36 = scalar_select %p35, 0, %s34
      %s37 = sadd.s32 %s17, %s19
      %p38 = scmp.lt.s32.totalorder %s37, 1
      %s39 = scalar_select %p38, %s37, 1
      %s40 = sadd.s32 %s36, %s28
      %p41 = scmp.lt.s32.totalorder %s40, 1
      %s42 = scalar_select %p41, %s40, 1
      %s43 = ssub.s32 %s18, %s32
      %s44 = ssub.s32 %s39, %s42
      %s45 = sor.u32 %s43, %s44
      %p46 = scmp.eq.s32.totalorder %s45, 0
      %s48 = sadd.s32 %s47, 1
      %s49 = scalar_select %p46, %s47, %s48
      %p52 = pneg %p46
      %p53 = scmp.eq.s32.totalorder %s10, 1
      %p54 = por %p52, %p53
      %p55 = scmp.ne.s32.totalorder %s47, %s50
      %p56 = scmp.eq.s32.totalorder %s10, 0
      %p57 = por %p55, %p56
      %p58 = scmp.ne.s32.totalorder %s47, %s50
      %p59 = scmp.eq.s32.totalorder %s15, 1
      %p60 = por %p58, %p59
      %p61 = scmp.ne.s32.totalorder %s50, %s51
      %p62 = scmp.eq.s32.totalorder %s15, 0
      %p63 = por %p61, %p62
      %p64 = scmp.ne.s32.totalorder %s50, %s51
      %p65 = scmp.eq.s32.totalorder %s16, 1
      %p66 = por %p64, %p65
      %p68 = scmp.ne.s32.totalorder %s51, %s67
      %p69 = scmp.eq.s32.totalorder %s16, 0
      %p70 = por %p68, %p69
      %s71 = ssub.s32 %s17, %s36
      %s72 = ssub.s32 %s18, %s32
      %s73 = sor.u32 %s71, %s72
      %p74 = scmp.eq.s32.totalorder %s73, 0
      %s76 = sadd.s32 %s75, 1
      %s77 = scalar_select %p74, %s75, %s76
      %p80 = pneg %p74
      %p81 = scmp.eq.s32.totalorder %s10, 1
      %p82 = por %p80, %p81
      %p83 = scmp.ne.s32.totalorder %s75, %s78
      %p84 = scmp.eq.s32.totalorder %s10, 0
      %p85 = por %p83, %p84
      %p86 = scmp.ne.s32.totalorder %s75, %s78
      %p87 = scmp.eq.s32.totalorder %s15, 1
      %p88 = por %p86, %p87
      %p89 = scmp.ne.s32.totalorder %s78, %s79
      %p90 = scmp.eq.s32.totalorder %s15, 0
      %p91 = por %p89, %p90
      %p92 = scmp.ne.s32.totalorder %s78, %s79
      %p93 = scmp.eq.s32.totalorder %s16, 1
      %p94 = por %p92, %p93
      %p96 = scmp.ne.s32.totalorder %s79, %s95
      %p97 = scmp.eq.s32.totalorder %s16, 0
      %p98 = por %p96, %p97
      %p99 = scmp.le.s32.totalorder 1, %s10
      %p100 = scmp.lt.s32.totalorder %s10, 3
      %p101 = pnand %p99, %p100
      %p102 = pneg %p101
      // Predicated region
      $region9: #{tpu_custom_call.1} parent=5 // pred_check
        _
      $region10: #{tpu_custom_call.1} parent=5 // pred_check_branch
        %104 = sbr.rel (%p101) target = $region12
      $region11: #{tpu_custom_call.1} parent=5 // pred_region
        %s105 = ssub.s32 %s10, 1
      $region12: #{tpu_custom_call.1} parent=5 // pred_fallthru
        _
      %p106 = scmp.lt.s32.totalorder %s10, 2
      // Predicated region
      $region13: #{tpu_custom_call.1} parent=5 // pred_check
        %p107 = pneg %p106
      $region14: #{tpu_custom_call.1} parent=5 // pred_check_branch
        %109 = sbr.rel (%p107) target = $region16
      $region15: #{tpu_custom_call.1} parent=5 // pred_region
        // Predicated region
        $region17: #{tpu_custom_call.1} parent=15 // pred_check
          %p110 = pneg %p57
        $region18: #{tpu_custom_call.1} parent=15 // pred_check_branch
          %112 = sbr.rel (%p110) target = $region20
        $region19: #{tpu_custom_call.1} parent=15 // pred_region
          %s113 = sand.u32 %s47, 1
          %s114 = scalar_lea.sflag [#allocation4], %s113
          %s115 = sand.u32 %s47, 1
          %s116 = smul.addr %s115, 8
          %s117 = scalar_lea.vmem [#allocation3], %s116
          %s118 = sadd.s32 %s17, %s19
          %p119 = scmp.lt.s32.totalorder %s118, 1
          %s120 = scalar_select %p119, %s118, 1
          %122 = vsyncadd %s114, 0
          %s123 = smul.addr %s18, 2
          %s124 = sadd.s32 %s120, %s123
          %s125 = smul.addr %s124, 8
          %s126 = scalar_lea.hbm %s0, %s125
          %s128 = sshll.u32 %s126, 4
          %s129 = int_to_ptr.hbm [resolvable:$true] %s128
          %s130 = sshll.u32 %s117, 4
          %s131 = int_to_ptr.vmem [resolvable:$true] %s130
          %133 = dma.hbm_to_vmem [thread:$0]  %s129, 128, %s131, %s114
        $region20: #{tpu_custom_call.1} parent=15 // pred_fallthru
          _
      $region16: #{tpu_custom_call.1} parent=5 // pred_fallthru
        _
      %p134 = scmp.le.s32.totalorder 1, %s10
      %p135 = scmp.lt.s32.totalorder %s10, 3
      %p136 = pnand %p134, %p135
      %p137 = pneg %p136
      // Predicated region
      $region21: #{tpu_custom_call.1} parent=5 // pred_check
        _
      $region22: #{tpu_custom_call.1} parent=5 // pred_check_branch
        %139 = sbr.rel (%p136) target = $region24
      $region23: #{tpu_custom_call.1} parent=5 // pred_region
        %s140 = ssub.s32 %s10, 1
        %s141 = sand.u32 %s50, 1
        %s142 = scalar_lea.sflag [#allocation4], %s141
        %s143 = sand.u32 %s50, 1
        %s144 = smul.addr %s143, 8
        %s145 = scalar_lea.vmem [#allocation3], %s144
        // Predicated region
        $region25: #{tpu_custom_call.1} parent=23 // pred_check
          %p146 = pneg %p63
        $region26: #{tpu_custom_call.1} parent=23 // pred_check_branch
          %148 = sbr.rel (%p146) target = $region28
        $region27: #{tpu_custom_call.1} parent=23 // pred_region
          %150 = dma.done %s142, 128
        $region28: #{tpu_custom_call.1} parent=23 // pred_fallthru
          _
        %s151 = sand.u32 %s50, 1
        %s152 = scalar_lea.sflag [#allocation4], %s151
        %s153 = sand.u32 %s50, 1
        %s154 = smul.addr %s153, 8
        %s155 = scalar_lea.vmem [#allocation3], %s154
        %p156 = pneg %p63
        %p157 = pneg %p60
        %p158 = pneg %p91
        %p159 = pneg %p88
        %p160 = scmp.lt.s32.totalorder %s20, 1
        %s161 = scalar_select %p160, %s20, 1
        %p162 = scmp.lt.s32.totalorder %s21, 0
        %s163 = scalar_select %p162, %s21, 0
        %s164 = sadd.s32 %s163, %s161
        %s165 = smul.addr %s164, 8
        %s166 = scalar_lea.vmem %s1, %s165
        %s167 = sadd.s32 %s20, %s22
        %p168 = scmp.lt.s32.totalorder %s167, 1
        %s169 = scalar_select %p168, %s167, 1
        %p170 = scmp.lt.s32.totalorder %s20, 1
        %s171 = scalar_select %p170, %s20, 1
        %p172 = scmp.lt.s32.totalorder %s21, 0
        %s173 = scalar_select %p172, %s21, 0
        %s174 = sadd.s32 %s173, %s171
        %s175 = smul.addr %s174, 8
        %s176 = scalar_lea.vmem %s1, %s175
        %p177 = scmp.eq.s32.totalorder %s22, 0
        // Predicated region
        $region29: #{tpu_custom_call.1} parent=23 // pred_check
          %p178 = pneg %p177
        $region30: #{tpu_custom_call.1} parent=23 // pred_check_branch
          %180 = sbr.rel (%p178) target = $region32
        $region31: #{tpu_custom_call.1} parent=23 // pred_region
          %vm181 = vcmask 7168
          %182 = vst.msk [vmem:[#allocation2] sm:$0xff] %vm181, 0.0
        $region32: #{tpu_custom_call.1} parent=23 // pred_fallthru
          _
        %v183 = vld [vmem:[#allocation2] sm:$0xff]
        %v184 = vld [vmem:[%s145] sm:$0xff]
        %185 = vadd.xlane.f32.xlu0 %v184
        %v186 = vpop.xlane.xlu0 %185
        %v187 = vadd.f32 %v183, %v186
        %vm188 = vcmask 7168
        %189 = vst.msk [vmem:[#allocation2] sm:$0xff] %vm188, %v187
        // Predicated region
        $region33: #{tpu_custom_call.1} parent=23 // pred_check
          %p190 = pneg %p177
        $region34: #{tpu_custom_call.1} parent=23 // pred_check_branch
          %192 = sbr.rel (%p190) target = $region36
        $region35: #{tpu_custom_call.1} parent=23 // pred_region
          %v193 = vld [vmem:[#allocation2] sm:$0xff]
          %194 = vst.msk [vmem:[%s176] sm:$0xff] %vm188, %v193
        $region36: #{tpu_custom_call.1} parent=23 // pred_fallthru
          _
        %p195 = scmp.lt.s32.totalorder %s20, 1
        %s196 = scalar_select %p195, %s20, 1
        %p197 = scmp.lt.s32.totalorder %s21, 0
        %s198 = scalar_select %p197, %s21, 0
        %s199 = sadd.s32 %s198, %s196
        %s200 = smul.addr %s199, 8
        %s201 = scalar_lea.vmem %s1, %s200
        // Predicated region
        $region37: #{tpu_custom_call.1} parent=23 // pred_check
          %p202 = pneg %p88
        $region38: #{tpu_custom_call.1} parent=23 // pred_check_branch
          %204 = sbr.rel (%p202) target = $region40
        $region39: #{tpu_custom_call.1} parent=23 // pred_region
          _
        $region40: #{tpu_custom_call.1} parent=23 // pred_fallthru
          _
      $region24: #{tpu_custom_call.1} parent=5 // pred_fallthru
        _
      %p205 = scmp.le.s32.totalorder 2, %s10
      // Predicated region
      $region41: #{tpu_custom_call.1} parent=5 // pred_check
        %p206 = pneg %p205
      $region42: #{tpu_custom_call.1} parent=5 // pred_check_branch
        %208 = sbr.rel (%p206) target = $region44
      $region43: #{tpu_custom_call.1} parent=5 // pred_region
        %s209 = ssub.s32 %s10, 2
        // Predicated region
        $region45: #{tpu_custom_call.1} parent=43 // pred_check
          %p210 = pneg %p94
        $region46: #{tpu_custom_call.1} parent=43 // pred_check_branch
          %212 = sbr.rel (%p210) target = $region48
        $region47: #{tpu_custom_call.1} parent=43 // pred_region
          %p213 = scmp.lt.s32.totalorder %s23, 1
          %s214 = scalar_select %p213, %s23, 1
          %p215 = scmp.lt.s32.totalorder %s24, 0
          %s216 = scalar_select %p215, %s24, 0
          %s217 = sadd.s32 %s216, %s214
          %s218 = smul.addr %s217, 8
          %s219 = scalar_lea.vmem %s1, %s218
        $region48: #{tpu_custom_call.1} parent=43 // pred_fallthru
          _
      $region44: #{tpu_custom_call.1} parent=5 // pred_fallthru
        _
    $region6: #{tpu_custom_call.1} parent=1 // loop_footer
      %s14 = sadd.s32 1, %s10
    $region7: #{tpu_custom_call.1} parent=1 // loop_footer_branch
      %9 = sbr.rel target = $region3
    $region8: #{tpu_custom_call.1} parent=1 // loop_exit
      _
    %220 = vsyncpa [#allocation4], 1
    %s221 = scalar_lea.sflag [#allocation4], 1
    %222 = vsyncpa %s221, 1

</llo_original>
